<compile_context>
chip_gen: v6e
topology: v6e:2x2x1
jax: 0.10.0
libtpu: 0.0.40
codegen_flags: <defaults>
</compile_context>

<pallas_src>
import jax
import jax.numpy as jnp
from jax import lax
from jax.experimental import pallas as pl
from jax.experimental.pallas import tpu as pltpu


# ---------------------------------------------------------------------------
# Parameter setup (equivalent of _create_positional_encoding in __init__)
# ---------------------------------------------------------------------------
def create_positional_encoding(max_sentences: int, d_model: int) -> jnp.ndarray:
    # Like the PyTorch version, this requires an even d_model.
    if d_model % 2 != 0:
        raise ValueError("d_model must be even (matches the PyTorch module).")
    position = jnp.arange(max_sentences, dtype=jnp.float32)[:, None]          # (L, 1)
    div_term = jnp.exp(
        jnp.arange(0, d_model, 2, dtype=jnp.float32)
        * (-jnp.log(jnp.float32(10000.0)) / d_model)
    )                                                                          # (d_model//2,)
    angles = position * div_term                                               # (L, d_model//2)
    pe = jnp.zeros((max_sentences, d_model), dtype=jnp.float32)
    pe = pe.at[:, 0::2].set(jnp.sin(angles))
    pe = pe.at[:, 1::2].set(jnp.cos(angles))
    return pe                                                                  # (L, d_model)


# ---------------------------------------------------------------------------
# Pallas kernels: vectorized row gather of a (tm, td) output tile
# ---------------------------------------------------------------------------
def _take_gather_kernel(idx_ref, pe_ref, out_ref):
    # idx_ref : (tm, 1)  int32 VMEM  -- sentence positions for this row tile
    # pe_ref  : (L, td)  f32   VMEM  -- pe-table slab, resident across row tiles
    # out_ref : (tm, td) f32   VMEM  -- gathered rows (full-vreg, unmasked stores)
    idx = idx_ref[...][:, 0]                                   # (tm,)
    out_ref[...] = jnp.take(pe_ref[...], idx, axis=0, mode="clip")


def _onehot_gather_kernel(idx_ref, pe_ref, out_ref):
    # Fallback vector path: gather via the (otherwise idle) MXU.
    # one_hot is exactly 0/1 in bf16; the f32 table is split error-free into
    # three bf16 pieces (hi+mid+lo == x exactly), so the three bf16 matmuls
    # accumulated in f32 reproduce the table rows bit-exactly.
    idx = idx_ref[...]                                          # (tm, 1) int32
    tab = pe_ref[...]                                           # (L, td) f32
    tm, num_rows = idx.shape[0], tab.shape[0]
    one_hot = (lax.broadcasted_iota(jnp.int32, (tm, num_rows), 1) == idx)
    one_hot = one_hot.astype(jnp.bfloat16)                      # (tm, L)

    hi = tab.astype(jnp.bfloat16)
    r1 = tab - hi.astype(jnp.float32)
    mid = r1.astype(jnp.bfloat16)
    lo = (r1 - mid.astype(jnp.float32)).astype(jnp.bfloat16)

    dn = (((1,), (0,)), ((), ()))
    acc = lax.dot_general(one_hot, hi, dn, preferred_element_type=jnp.float32)
    acc += lax.dot_general(one_hot, mid, dn, preferred_element_type=jnp.float32)
    acc += lax.dot_general(one_hot, lo, dn, preferred_element_type=jnp.float32)
    out_ref[...] = acc.astype(out_ref.dtype)


# ---------------------------------------------------------------------------
# Wrapper (equivalent of forward())
# ---------------------------------------------------------------------------
_LANE = 128               # lane width (last-dim alignment for unmasked stores)
_SUBLANE = 8              # sublane alignment for row tiles
_MAX_TM = 256             # rows gathered per grid step (vectorized body)
_MAX_TD = 512             # d_model lanes per grid step (multiple of 128)

_IMPL_CACHE = {}          # static config -> (impl, single_buffer_table) that compiled
_LAST_IMPL_USED = None    # "take" | "onehot" | "xla" (introspection only)


def _round_up(x: int, m: int) -> int:
    return ((x + m - 1) // m) * m


def _vmem_capacity_bytes() -> int:
    try:
        return int(pltpu.get_tpu_info().vmem_capacity_bytes)
    except Exception:
        return 64 << 20   # conservative per-TensorCore default (v7x)


def _pallas_gather(pos2d, pe_pad, *, tm, td, impl, single_buffer_table, vmem_limit):
    s_padded = pos2d.shape[0]
    num_rows, d_padded = pe_pad.shape
    kernel = _take_gather_kernel if impl == "take" else _onehot_gather_kernel

    if single_buffer_table:
        # Table block is constant across the inner (row) grid axis -> single buffer
        # halves its resident VMEM (feedback: Buffered(1) for the constant block).
        table_spec = pl.BlockSpec((num_rows, td), lambda j, i: (0, j),
                                  pipeline_mode=pl.Buffered(1))
    else:
        table_spec = pl.BlockSpec((num_rows, td), lambda j, i: (0, j))

    return pl.pallas_call(
        kernel,
        out_shape=jax.ShapeDtypeStruct((s_padded, d_padded), pe_pad.dtype),
        grid_spec=pltpu.PrefetchScalarGridSpec(
            num_scalar_prefetch=0,
            # (j: d_model tiles, i: row tiles) -- rows innermost so the table slab
            # stays resident across the inner loop; both axes are independent.
            grid=(d_padded // td, s_padded // tm),
            in_specs=[
                pl.BlockSpec((tm, 1), lambda j, i: (i, 0)),   # positions (VMEM vector)
                table_spec,                                   # pe-table slab
            ],
            out_specs=pl.BlockSpec((tm, td), lambda j, i: (i, j)),
        ),
        compiler_params=pltpu.CompilerParams(
            dimension_semantics=("parallel", "parallel"),
            vmem_limit_bytes=vmem_limit,
        ),
    )(pos2d, pe_pad)


def document_level_positional_encoding(pe_table: jnp.ndarray,
                                       sentence_position) -> jnp.ndarray:
    """Equivalent of forward(): returns pe[:, sentence_position, :]."""
    global _LAST_IMPL_USED

    pe_table = jnp.asarray(pe_table, jnp.float32)
    num_rows, d_model = pe_table.shape

    pos = jnp.asarray(sentence_position, jnp.int32)
    idx_shape = pos.shape
    flat = pos.reshape((-1,))
    s = int(flat.shape[0])
    # PyTorch raises IndexError on out-of-range indices; we clamp instead
    # (documented deviation -- TPU kernels cannot raise).
    flat = jnp.clip(flat, 0, num_rows - 1)

    # Lane-pad d_model to a multiple of 128 so every output store is a full,
    # unmasked vst (lane-dense output is the biggest single lever).
    d_padded = _round_up(d_model, _LANE)
    pe_pad = pe_table if d_padded == d_model else jnp.pad(
        pe_table, ((0, 0), (0, d_padded - d_model)))

    # d_model tile: largest multiple of 128 that divides d_padded, capped at _MAX_TD.
    td = d_padded
    if td > _MAX_TD:
        td = next(c for c in range(_MAX_TD, 0, -_LANE) if d_padded % c == 0)

    # Row tile: multiple of 8 sublanes, capped at _MAX_TM.
    tm = _MAX_TM if s >= _MAX_TM else _round_up(max(s, 1), _SUBLANE)
    s_padded = _round_up(max(s, 1), tm)
    pos2d = jnp.zeros((s_padded, 1), jnp.int32).at[:s, 0].set(flat)

    # Generation-aware VMEM accounting from actual buffer sizes.
    itemsize = 4
    slab = num_rows * td * itemsize                      # one table slab
    out_bufs = 2 * tm * td * itemsize                    # double-buffered output tile
    idx_bufs = 2 * tm * _LANE * itemsize                 # (tm,1) block lane-pads to 128
    onehot_tmp = tm * _round_up(num_rows, _LANE) * itemsize
    needed = 3 * slab + out_bufs + idx_bufs + onehot_tmp  # slab buffer + in-kernel copies
    capacity = _vmem_capacity_bytes()

    if needed + (4 << 20) > capacity:
        # TODO(synk): tables too large for a single VMEM slab should use a manual
        # HBM DMA-gather Pallas path; fall back to XLA's fused gather instead.
        _LAST_IMPL_USED = "xla"
        out = jnp.take(pe_table, flat, axis=0)
        return out.reshape((1,) + idx_shape + (d_model,))

    vmem_limit = int(min(needed + (4 << 20), capacity))

    key = (num_rows, d_padded, td, tm, s_padded)
    if key in _IMPL_CACHE:
        attempts = [_IMPL_CACHE[key]]
    else:
        # Prefer the dynamic-gather path; fall back to the MXU one-hot gather
        # (and to default double-buffering) if a configuration fails to lower.
        attempts = [("take", True), ("take", False),
                    ("onehot", True), ("onehot", False)]

    out = None
    last_err = None
    for impl, single_buf in attempts:
        try:
            out = _pallas_gather(pos2d, pe_pad, tm=tm, td=td, impl=impl,
                                 single_buffer_table=single_buf,
                                 vmem_limit=vmem_limit)
            out = jax.block_until_ready(out)
            _IMPL_CACHE[key] = (impl, single_buf)
            _LAST_IMPL_USED = impl
            break
        except Exception as e:      # lowering/compile failure -> try next variant
            last_err = e
            out = None
    if out is None:
        raise last_err

    # match PyTorch: leading batch dim of 1; drop row/lane padding.
    return out[:s, :d_model].reshape((1,) + idx_shape + (d_model,))


# ---------------------------------------------------------------------------
# Demo / self-check
# ---------------------------------------------------------------------------
if __name__ == "__main__":
    d_model = 256          # small, lane-aligned (BERT-style dims also work)
    max_sentences = 64
    seq = 20               # not a multiple of 8 -> exercises row padding

    # deterministic "parameters" (the module's __init__ table)
    pe_table = create_positional_encoding(max_sentences, d_model)

    # deterministic example input: indices of sentences in the document
    key = jax.random.PRNGKey(0)
    sentence_position = jax.random.randint(key, (seq,), 0, max_sentences,
                                           dtype=jnp.int32)

    result = jax.block_until_ready(
        document_level_positional_encoding(pe_table, sentence_position))

    # reference (plain JAX indexing, mirrors torch pe[:, sentence_position, :])
    reference = pe_table[None, :, :][:, sentence_position, :]

    assert result.shape == (1, seq, d_model), result.shape
    assert result.dtype == jnp.float32, result.dtype
    assert jnp.allclose(result, reference, atol=0.0, rtol=0.0), (
        f"mismatch vs reference gather (impl={_LAST_IMPL_USED})")

    # scalar position -> (1, d_model), mirroring pe[:, i, :] in PyTorch
    res_scalar = jax.block_until_ready(
        document_level_positional_encoding(pe_table, jnp.int32(7)))
    assert res_scalar.shape == (1, d_model), res_scalar.shape
    assert jnp.allclose(res_scalar, pe_table[None, 7, :], atol=0.0, rtol=0.0), (
        f"scalar-index mismatch (impl={_LAST_IMPL_USED})")

    print("KERNEL_OK")
</pallas_src>

<mosaic_0001>
module attributes {stable_mosaic.version = 11 : i64} {
  func.func @_onehot_gather_kernel(%arg0: i32, %arg1: i32, %arg2: memref<24x1xi32, #tpu.memory_space<vmem>>, %arg3: memref<64x256xf32, #tpu.memory_space<vmem>>, %arg4: memref<24x256xf32, #tpu.memory_space<vmem>>) attributes {dimension_semantics = [#tpu.dimension_semantics<parallel>, #tpu.dimension_semantics<parallel>], iteration_bounds = array<i64: 1, 1>, scalar_prefetch = 0 : i64, scratch_operands = 0 : i64, tpu.core_type = #tpu.core_type<tc>, window_params = [{transform_indices = @transform_0, window_bounds = array<i64: 24, 1>}, {pipeline_mode = #tpu.pipeline_mode<synchronous>, transform_indices = @transform_1, window_bounds = array<i64: 64, 256>}, {transform_indices = @transform_2, window_bounds = array<i64: 24, 256>}]} {
    %c0 = arith.constant 0 : index
    %c0_0 = arith.constant 0 : index
    %0 = vector.load %arg2[%c0, %c0_0] : memref<24x1xi32, #tpu.memory_space<vmem>>, vector<24x1xi32>
    %c0_1 = arith.constant 0 : index
    %c0_2 = arith.constant 0 : index
    %1 = vector.load %arg3[%c0_1, %c0_2] : memref<64x256xf32, #tpu.memory_space<vmem>>, vector<64x256xf32>
    %2 = tpu.iota {dimensions = array<i32: 1>} : vector<24x64xi32>
    %3 = vector.broadcast %0 : vector<24x1xi32> to vector<24x64xi32>
    %4 = arith.cmpi eq, %2, %3 : vector<24x64xi32>
    %5 = arith.extui %4 : vector<24x64xi1> to vector<24x64xi32>
    %6 = arith.sitofp %5 : vector<24x64xi32> to vector<24x64xf32>
    %7 = arith.truncf %6 : vector<24x64xf32> to vector<24x64xbf16>
    %8 = arith.truncf %1 : vector<64x256xf32> to vector<64x256xbf16>
    %9 = arith.extf %8 : vector<64x256xbf16> to vector<64x256xf32>
    %10 = arith.subf %1, %9 : vector<64x256xf32>
    %11 = arith.truncf %10 : vector<64x256xf32> to vector<64x256xbf16>
    %12 = arith.extf %11 : vector<64x256xbf16> to vector<64x256xf32>
    %13 = arith.subf %10, %12 : vector<64x256xf32>
    %14 = arith.truncf %13 : vector<64x256xf32> to vector<64x256xbf16>
    %cst = arith.constant dense<0.000000e+00> : vector<24x256xf32>
    %15 = tpu.matmul %7, %8, %cst {dimension_numbers = #tpu.dot_dimension_numbers<[1], [0], [0], [1], [0, 0, 1, 1], [], []>} : vector<24x64xbf16>, vector<64x256xbf16>, vector<24x256xf32> -> vector<24x256xf32>
    %cst_3 = arith.constant dense<0.000000e+00> : vector<24x256xf32>
    %16 = tpu.matmul %7, %11, %cst_3 {dimension_numbers = #tpu.dot_dimension_numbers<[1], [0], [0], [1], [0, 0, 1, 1], [], []>} : vector<24x64xbf16>, vector<64x256xbf16>, vector<24x256xf32> -> vector<24x256xf32>
    %17 = arith.addf %15, %16 : vector<24x256xf32>
    %cst_4 = arith.constant dense<0.000000e+00> : vector<24x256xf32>
    %18 = tpu.matmul %7, %14, %cst_4 {dimension_numbers = #tpu.dot_dimension_numbers<[1], [0], [0], [1], [0, 0, 1, 1], [], []>} : vector<24x64xbf16>, vector<64x256xbf16>, vector<24x256xf32> -> vector<24x256xf32>
    %19 = arith.addf %17, %18 : vector<24x256xf32>
    %c0_5 = arith.constant 0 : index
    %c0_6 = arith.constant 0 : index
    %20 = vector.load %arg4[%c0_5, %c0_6] : memref<24x256xf32, #tpu.memory_space<vmem>>, vector<24x256xf32>
    tpu.vector_store %arg4[%c0_5, %c0_6], %19 {strides = array<i32>} : memref<24x256xf32, #tpu.memory_space<vmem>>, vector<24x256xf32>,
    return
  }
  func.func @transform_0(%arg0: i32, %arg1: i32) -> (i32, i32) {
    %c0_i32 = arith.constant 0 : i32
    %c0_i32_0 = arith.constant 0 : i32
    return %arg1, %c0_i32 : i32, i32
  }
  func.func @transform_1(%arg0: i32, %arg1: i32) -> (i32, i32) {
    %c0_i32 = arith.constant 0 : i32
    %c0_i32_0 = arith.constant 0 : i32
    return %c0_i32, %arg0 : i32, i32
  }
  func.func @transform_2(%arg0: i32, %arg1: i32) -> (i32, i32) {
    %c0_i32 = arith.constant 0 : i32
    return %arg1, %arg0 : i32, i32
  }
}

module attributes {stable_mosaic.version = 11 : i64} {
  func.func @_onehot_gather_kernel(%arg0: i32, %arg1: i32, %arg2: memref<24x1xi32, #tpu.memory_space<vmem>>, %arg3: memref<64x256xf32, #tpu.memory_space<vmem>>, %arg4: memref<24x256xf32, #tpu.memory_space<vmem>>) attributes {dimension_semantics = [#tpu.dimension_semantics<parallel>, #tpu.dimension_semantics<parallel>], iteration_bounds = array<i64: 1, 1>, scalar_prefetch = 0 : i64, scratch_operands = 0 : i64, tpu.core_type = #tpu.core_type<tc>, window_params = [{transform_indices = @transform_0, window_bounds = array<i64: 24, 1>}, {transform_indices = @transform_1, window_bounds = array<i64: 64, 256>}, {transform_indices = @transform_2, window_bounds = array<i64: 24, 256>}]} {
    %c0 = arith.constant 0 : index
    %c0_0 = arith.constant 0 : index
    %0 = vector.load %arg2[%c0, %c0_0] : memref<24x1xi32, #tpu.memory_space<vmem>>, vector<24x1xi32>
    %c0_1 = arith.constant 0 : index
    %c0_2 = arith.constant 0 : index
    %1 = vector.load %arg3[%c0_1, %c0_2] : memref<64x256xf32, #tpu.memory_space<vmem>>, vector<64x256xf32>
    %2 = tpu.iota {dimensions = array<i32: 1>} : vector<24x64xi32>
    %3 = vector.broadcast %0 : vector<24x1xi32> to vector<24x64xi32>
    %4 = arith.cmpi eq, %2, %3 : vector<24x64xi32>
    %5 = arith.extui %4 : vector<24x64xi1> to vector<24x64xi32>
    %6 = arith.sitofp %5 : vector<24x64xi32> to vector<24x64xf32>
    %7 = arith.truncf %6 : vector<24x64xf32> to vector<24x64xbf16>
    %8 = arith.truncf %1 : vector<64x256xf32> to vector<64x256xbf16>
    %9 = arith.extf %8 : vector<64x256xbf16> to vector<64x256xf32>
    %10 = arith.subf %1, %9 : vector<64x256xf32>
    %11 = arith.truncf %10 : vector<64x256xf32> to vector<64x256xbf16>
    %12 = arith.extf %11 : vector<64x256xbf16> to vector<64x256xf32>
    %13 = arith.subf %10, %12 : vector<64x256xf32>
    %14 = arith.truncf %13 : vector<64x256xf32> to vector<64x256xbf16>
    %cst = arith.constant dense<0.000000e+00> : vector<24x256xf32>
    %15 = tpu.matmul %7, %8, %cst {dimension_numbers = #tpu.dot_dimension_numbers<[1], [0], [0], [1], [0, 0, 1, 1], [], []>} : vector<24x64xbf16>, vector<64x256xbf16>, vector<24x256xf32> -> vector<24x256xf32>
    %cst_3 = arith.constant dense<0.000000e+00> : vector<24x256xf32>
    %16 = tpu.matmul %7, %11, %cst_3 {dimension_numbers = #tpu.dot_dimension_numbers<[1], [0], [0], [1], [0, 0, 1, 1], [], []>} : vector<24x64xbf16>, vector<64x256xbf16>, vector<24x256xf32> -> vector<24x256xf32>
    %17 = arith.addf %15, %16 : vector<24x256xf32>
    %cst_4 = arith.constant dense<0.000000e+00> : vector<24x256xf32>
    %18 = tpu.matmul %7, %14, %cst_4 {dimension_numbers = #tpu.dot_dimension_numbers<[1], [0], [0], [1], [0, 0, 1, 1], [], []>} : vector<24x64xbf16>, vector<64x256xbf16>, vector<24x256xf32> -> vector<24x256xf32>
    %19 = arith.addf %17, %18 : vector<24x256xf32>
    %c0_5 = arith.constant 0 : index
    %c0_6 = arith.constant 0 : index
    %20 = vector.load %arg4[%c0_5, %c0_6] : memref<24x256xf32, #tpu.memory_space<vmem>>, vector<24x256xf32>
    tpu.vector_store %arg4[%c0_5, %c0_6], %19 {strides = array<i32>} : memref<24x256xf32, #tpu.memory_space<vmem>>, vector<24x256xf32>,
    return
  }
  func.func @transform_0(%arg0: i32, %arg1: i32) -> (i32, i32) {
    %c0_i32 = arith.constant 0 : i32
    %c0_i32_0 = arith.constant 0 : i32
    return %arg1, %c0_i32 : i32, i32
  }
  func.func @transform_1(%arg0: i32, %arg1: i32) -> (i32, i32) {
    %c0_i32 = arith.constant 0 : i32
    %c0_i32_0 = arith.constant 0 : i32
    return %c0_i32, %arg0 : i32, i32
  }
  func.func @transform_2(%arg0: i32, %arg1: i32) -> (i32, i32) {
    %c0_i32 = arith.constant 0 : i32
    return %arg1, %arg0 : i32, i32
  }
}

</mosaic_0001>

<llo_original>
// kernel: tpu_custom_call.1
$region0: #{tpu_custom_call.1}
  #allocation0 [shape = 'u32[]', space=smem, size = 0x4, offset = 0x4, fixed_abs, tag = 'smem constant byte address 0x4 - core index']
  #allocation1 [shape = 'u32[144,128]{1,0:T(1,128)}', space=vmem, size = 0x12000, scoped, tag = 'internal scratch']
  %s0 = inlined_call_operand.vmem [shape: s32[24,1], index: 0, kind: input, shape index: {}]
  %s1 = inlined_call_operand.hbm [shape: f32[64,256], index: 1, kind: input, shape index: {}]
  %s2 = inlined_call_operand.hbm [shape: f32[24,256], index: 2, kind: output, shape index: {}]
  %s3 = sld [smem:[#allocation0]]
  $region22: #{tpu_custom_call.1} parent=0
    _
  %s5 = ssub.s32 1, %s3
  %s6 = scalar_select 0, %s5, %s3
  $region1: #{tpu_custom_call.1} parent=0
    #allocation2 [shape = 'u8[65536]{0}', space=vmem, size = 0x10000, scoped, tag = 'input window, operand 1, single buffered']
    #allocation3 [shape = 's32[1]{0}', space=sflag, size = 0x4, scoped, tag = 'scoped memory for tpu_custom_call.1']
    #allocation4 [shape = 's32[1]{0}', space=sflag, size = 0x4, scoped, tag = 'scoped memory for tpu_custom_call.1']
    #allocation5 [shape = 'u8[24576]{0}', space=vmem, size = 0x6000, scoped, tag = 'output window, operand 0, single buffered']
    %7 = vsyncpa [#allocation3], 0
    %8 = vsyncpa [#allocation4], 0
    // Predicated region
    $region2: #{tpu_custom_call.1} parent=1 // pred_check
      _
    $region3: #{tpu_custom_call.1} parent=1 // pred_check_branch
      %10 = sbr.rel (0) target = $region5
    $region4: #{tpu_custom_call.1} parent=1 // pred_region
      _
    $region5: #{tpu_custom_call.1} parent=1 // pred_fallthru
      _
    // Predicated region
    $region6: #{tpu_custom_call.1} parent=1 // pred_check
      _
    $region7: #{tpu_custom_call.1} parent=1 // pred_check_branch
      %12 = sbr.rel (0) target = $region9
    $region8: #{tpu_custom_call.1} parent=1 // pred_region
      %s14 = ssub.s32 2048, 2048
      %15 = vsyncadd [#allocation3], %s14
      %s16 = sshll.u32 [#allocation2], 4
      %s17 = int_to_ptr.vmem [resolvable:$true] %s16
      %22 = dma.hbm_to_vmem [thread:$0]  %s1, 2048, %s17, [#allocation3], 256, 256, 16
    $region9: #{tpu_custom_call.1} parent=1 // pred_fallthru
      _
    // Predicated region
    $region10: #{tpu_custom_call.1} parent=1 // pred_check
      _
    $region11: #{tpu_custom_call.1} parent=1 // pred_check_branch
      %24 = sbr.rel (0) target = $region13
    $region12: #{tpu_custom_call.1} parent=1 // pred_region
      %25 = dma.done [#allocation3], 2048
    $region13: #{tpu_custom_call.1} parent=1 // pred_fallthru
      _
    %v27 = vld [vmem:[%s0] sm:$0xff]
    %v28 = vld [vmem:[%s0 + $0x8] sm:$0xff]
    %v29 = vld [vmem:[%s0 + $0x10] sm:$0xff]
    %v30 = vld [vmem:[#allocation2] sm:$0xff]
    %v31 = vld [vmem:[#allocation2 + $0x8] sm:$0xff]
    %v32 = vld [vmem:[#allocation2 + $0x10] sm:$0xff]
    %v33 = vld [vmem:[#allocation2 + $0x18] sm:$0xff]
    %v34 = vld [vmem:[#allocation2 + $0x20] sm:$0xff]
    %v35 = vld [vmem:[#allocation2 + $0x28] sm:$0xff]
    %v36 = vld [vmem:[#allocation2 + $0x30] sm:$0xff]
    %v37 = vld [vmem:[#allocation2 + $0x38] sm:$0xff]
    %v38 = vld [vmem:[#allocation2 + $0x40] sm:$0xff]
    %v39 = vld [vmem:[#allocation2 + $0x48] sm:$0xff]
    %v40 = vld [vmem:[#allocation2 + $0x50] sm:$0xff]
    %v41 = vld [vmem:[#allocation2 + $0x58] sm:$0xff]
    %v42 = vld [vmem:[#allocation2 + $0x60] sm:$0xff]
    %v43 = vld [vmem:[#allocation2 + $0x68] sm:$0xff]
    %v44 = vld [vmem:[#allocation2 + $0x70] sm:$0xff]
    %v45 = vld [vmem:[#allocation2 + $0x78] sm:$0xff]
    %v46 = vlaneseq
    %v47 = vand.u32 %v46, 127
    %48 = vset.pattern.permute.xlu0 0
    %49 = vperm.xlu0 %48, %v27
    %v50 = vpop.permute.xlu0 %49
    %51 = vset.pattern.permute.xlu0 0
    %52 = vperm.xlu0 %51, %v28
    %v53 = vpop.permute.xlu0 %52
    %54 = vset.pattern.permute.xlu0 0
    %55 = vperm.xlu0 %54, %v29
    %v56 = vpop.permute.xlu0 %55
    %vm57 = vcmp.eq.s32.totalorder %v47, %v50
    %vm58 = vcmp.eq.s32.totalorder %v47, %v53
    %vm59 = vcmp.eq.s32.totalorder %v47, %v56
    %v60 = vsel %vm57, 1, 0
    %v61 = vsel %vm58, 1, 0
    %v62 = vsel %vm59, 1, 0
    %v63 = vcvt.s32.f32 %v60
    %v64 = vcvt.s32.f32 %v61
    %v65 = vcvt.s32.f32 %v62
    %v66 = vpack.c.bf16 %v64, %v63
    %v67 = vpack.c.bf16 %v65, %v65
    %v68 = vpack.c.bf16 %v32, %v30
    %v69 = vpack.c.bf16 %v33, %v31
    %v70 = vpack.c.bf16 %v36, %v34
    %v71 = vpack.c.bf16 %v37, %v35
    %v72 = vpack.c.bf16 %v40, %v38
    %v73 = vpack.c.bf16 %v41, %v39
    %v74 = vpack.c.bf16 %v44, %v42
    %v75 = vpack.c.bf16 %v45, %v43
    %v76 = vunpack.c.l.bf16 %v68
    %v77 = vunpack.c.l.bf16 %v69
    %v78 = vunpack.c.h.bf16 %v68
    %v79 = vunpack.c.h.bf16 %v69
    %v80 = vunpack.c.l.bf16 %v70
    %v81 = vunpack.c.l.bf16 %v71
    %v82 = vunpack.c.h.bf16 %v70
    %v83 = vunpack.c.h.bf16 %v71
    %v84 = vunpack.c.l.bf16 %v72
    %v85 = vunpack.c.l.bf16 %v73
    %v86 = vunpack.c.h.bf16 %v72
    %v87 = vunpack.c.h.bf16 %v73
    %v88 = vunpack.c.l.bf16 %v74
    %v89 = vunpack.c.l.bf16 %v75
    %v90 = vunpack.c.h.bf16 %v74
    %v91 = vunpack.c.h.bf16 %v75
    %v92 = vsub.f32 %v30, %v76
    %v93 = vsub.f32 %v31, %v77
    %v94 = vsub.f32 %v32, %v78
    %v95 = vsub.f32 %v33, %v79
    %v96 = vsub.f32 %v34, %v80
    %v97 = vsub.f32 %v35, %v81
    %v98 = vsub.f32 %v36, %v82
    %v99 = vsub.f32 %v37, %v83
    %v100 = vsub.f32 %v38, %v84
    %v101 = vsub.f32 %v39, %v85
    %v102 = vsub.f32 %v40, %v86
    %v103 = vsub.f32 %v41, %v87
    %v104 = vsub.f32 %v42, %v88
    %v105 = vsub.f32 %v43, %v89
    %v106 = vsub.f32 %v44, %v90
    %v107 = vsub.f32 %v45, %v91
    %v108 = vpack.c.bf16 %v94, %v92
    %v109 = vpack.c.bf16 %v95, %v93
    %v110 = vpack.c.bf16 %v98, %v96
    %v111 = vpack.c.bf16 %v99, %v97
    %v112 = vpack.c.bf16 %v102, %v100
    %v113 = vpack.c.bf16 %v103, %v101
    %v114 = vpack.c.bf16 %v106, %v104
    %v115 = vpack.c.bf16 %v107, %v105
    %v116 = vunpack.c.l.bf16 %v108
    %v117 = vunpack.c.l.bf16 %v109
    %v118 = vunpack.c.h.bf16 %v108
    %v119 = vunpack.c.h.bf16 %v109
    %v120 = vunpack.c.l.bf16 %v110
    %v121 = vunpack.c.l.bf16 %v111
    %v122 = vunpack.c.h.bf16 %v110
    %v123 = vunpack.c.h.bf16 %v111
    %v124 = vunpack.c.l.bf16 %v112
    %v125 = vunpack.c.l.bf16 %v113
    %v126 = vunpack.c.h.bf16 %v112
    %v127 = vunpack.c.h.bf16 %v113
    %v128 = vunpack.c.l.bf16 %v114
    %v129 = vunpack.c.l.bf16 %v115
    %v130 = vunpack.c.h.bf16 %v114
    %v131 = vunpack.c.h.bf16 %v115
    %v132 = vsub.f32 %v92, %v116
    %v133 = vsub.f32 %v93, %v117
    %v134 = vsub.f32 %v94, %v118
    %v135 = vsub.f32 %v95, %v119
    %v136 = vsub.f32 %v96, %v120
    %v137 = vsub.f32 %v97, %v121
    %v138 = vsub.f32 %v98, %v122
    %v139 = vsub.f32 %v99, %v123
    %v140 = vsub.f32 %v100, %v124
    %v141 = vsub.f32 %v101, %v125
    %v142 = vsub.f32 %v102, %v126
    %v143 = vsub.f32 %v103, %v127
    %v144 = vsub.f32 %v104, %v128
    %v145 = vsub.f32 %v105, %v129
    %v146 = vsub.f32 %v106, %v130
    %v147 = vsub.f32 %v107, %v131
    %v148 = vpack.c.bf16 %v134, %v132
    %v149 = vpack.c.bf16 %v135, %v133
    %v150 = vpack.c.bf16 %v138, %v136
    %v151 = vpack.c.bf16 %v139, %v137
    %v152 = vpack.c.bf16 %v142, %v140
    %v153 = vpack.c.bf16 %v143, %v141
    %v154 = vpack.c.bf16 %v146, %v144
    %v155 = vpack.c.bf16 %v147, %v145
    %vm156 = vcmask 523264
    %v158 = vsel %vm156, %v66, 0
    %v161 = vsel %vm156, %v67, 0
    %163 = vmatprep.subr.bf16.mxu0 0
    %164 = vmatpush1.bf16.msra.mxu0 0
    %165 = vmatprep.subr.bf16.mxu0 0
    %166 = vmatpush1.bf16.msra.mxu0 0
    %167 = vmatprep.subr.bf16.mxu0 0
    %168 = vmatpush1.bf16.msra.mxu0 0
    %169 = vmatprep.subr.bf16.mxu0 0
    %170 = vmatpush1.bf16.msra.mxu0 0
    %171 = vmatprep.subr.bf16.mxu0 %v115
    %172 = vmatpush1.bf16.msra.mxu0 %v114
    %173 = vmatprep.subr.bf16.mxu0 %v113
    %174 = vmatpush1.bf16.msra.mxu0 %v112
    %175 = vmatprep.subr.bf16.mxu0 %v111
    %176 = vmatpush1.bf16.msra.mxu0 %v110
    %177 = vmatprep.subr.bf16.mxu0 %v109
    %178 = vmatpush1.bf16.msra.mxu0 %v108
    %179 = vmatprep.subr.bf16.mxu0 0
    %180 = vmatpush2.bf16.msra.mxu0 0
    %181 = vmatprep.subr.bf16.mxu0 0
    %182 = vmatpush2.bf16.msra.mxu0 0
    %183 = vmatprep.subr.bf16.mxu0 0
    %184 = vmatpush2.bf16.msra.mxu0 0
    %185 = vmatprep.subr.bf16.mxu0 0
    %186 = vmatpush2.bf16.msra.mxu0 0
    %187 = vmatprep.subr.bf16.mxu0 0
    %188 = vmatpush2.bf16.msra.mxu0 0
    %189 = vmatprep.subr.bf16.mxu0 0
    %190 = vmatpush2.bf16.msra.mxu0 0
    %191 = vmatprep.subr.bf16.mxu0 0
    %192 = vmatpush2.bf16.msra.mxu0 0
    %193 = vmatprep.subr.bf16.mxu0 0
    %194 = vmatpush2.bf16.msra.mxu0 0
    %195 = vmatprep.mubr.bf16.mxu0 0
    %196 = vmatmul.mubr.bf16.gmra.mxu0 %v158
    %v197 = vpop.f32.mrf.mxu0
    %v198 = vadd.f32 0.0, %v197
    %v199 = vpop.f32.mrf.mxu0
    %v200 = vadd.f32 0.0, %v199
    %v201 = vpop.f32.mrf.mxu0
    %v202 = vadd.f32 0.0, %v201
    %v203 = vpop.f32.mrf.mxu0
    %v204 = vadd.f32 0.0, %v203
    %205 = vmatprep.mubr.bf16.mxu0 0
    %206 = vmatmul.mubr.bf16.gmra.mxu0 %v161
    %v207 = vpop.f32.mrf.mxu0
    %v208 = vadd.f32 0.0, %v207
    %v209 = vpop.f32.mrf.mxu0
    %v210 = vadd.f32 0.0, %v209
    %v211 = vpop.f32.mrf.mxu0
    %v212 = vpop.f32.mrf.mxu0
    %213 = vdwg.mxu0
    %214 = vmatprep.subr.bf16.mxu0 0
    %215 = vmatpush1.bf16.msra.mxu0 0
    %216 = vmatprep.subr.bf16.mxu0 0
    %217 = vmatpush1.bf16.msra.mxu0 0
    %218 = vmatprep.subr.bf16.mxu0 0
    %219 = vmatpush1.bf16.msra.mxu0 0
    %220 = vmatprep.subr.bf16.mxu0 0
    %221 = vmatpush1.bf16.msra.mxu0 0
    %222 = vmatprep.subr.bf16.mxu0 %v75
    %223 = vmatpush1.bf16.msra.mxu0 %v74
    %224 = vmatprep.subr.bf16.mxu0 %v73
    %225 = vmatpush1.bf16.msra.mxu0 %v72
    %226 = vmatprep.subr.bf16.mxu0 %v71
    %227 = vmatpush1.bf16.msra.mxu0 %v70
    %228 = vmatprep.subr.bf16.mxu0 %v69
    %229 = vmatpush1.bf16.msra.mxu0 %v68
    %230 = vmatprep.subr.bf16.mxu0 0
    %231 = vmatpush2.bf16.msra.mxu0 0
    %232 = vmatprep.subr.bf16.mxu0 0
    %233 = vmatpush2.bf16.msra.mxu0 0
    %234 = vmatprep.subr.bf16.mxu0 0
    %235 = vmatpush2.bf16.msra.mxu0 0
    %236 = vmatprep.subr.bf16.mxu0 0
    %237 = vmatpush2.bf16.msra.mxu0 0
    %238 = vmatprep.subr.bf16.mxu0 0
    %239 = vmatpush2.bf16.msra.mxu0 0
    %240 = vmatprep.subr.bf16.mxu0 0
    %241 = vmatpush2.bf16.msra.mxu0 0
    %242 = vmatprep.subr.bf16.mxu0 0
    %243 = vmatpush2.bf16.msra.mxu0 0
    %244 = vmatprep.subr.bf16.mxu0 0
    %245 = vmatpush2.bf16.msra.mxu0 0
    %246 = vmatprep.mubr.bf16.mxu0 0
    %247 = vmatmul.mubr.bf16.gmra.mxu0 %v158
    %v248 = vpop.f32.mrf.mxu0
    %v249 = vadd.f32 %v198, %v248
    %v250 = vpop.f32.mrf.mxu0
    %v251 = vadd.f32 %v200, %v250
    %v252 = vpop.f32.mrf.mxu0
    %v253 = vadd.f32 %v202, %v252
    %v254 = vpop.f32.mrf.mxu0
    %v255 = vadd.f32 %v204, %v254
    %256 = vmatprep.mubr.bf16.mxu0 0
    %257 = vmatmul.mubr.bf16.gmra.mxu0 %v161
    %v258 = vpop.f32.mrf.mxu0
    %v259 = vadd.f32 %v208, %v258
    %v260 = vpop.f32.mrf.mxu0
    %v261 = vadd.f32 %v210, %v260
    %v262 = vpop.f32.mrf.mxu0
    %v263 = vpop.f32.mrf.mxu0
    %264 = vdwg.mxu0
    %265 = vmatprep.subr.bf16.mxu0 0
    %266 = vmatpush1.bf16.msra.mxu0 0
    %267 = vmatprep.subr.bf16.mxu0 0
    %268 = vmatpush1.bf16.msra.mxu0 0
    %269 = vmatprep.subr.bf16.mxu0 0
    %270 = vmatpush1.bf16.msra.mxu0 0
    %271 = vmatprep.subr.bf16.mxu0 0
    %272 = vmatpush1.bf16.msra.mxu0 0
    %273 = vmatprep.subr.bf16.mxu0 %v155
    %274 = vmatpush1.bf16.msra.mxu0 %v154
    %275 = vmatprep.subr.bf16.mxu0 %v153
    %276 = vmatpush1.bf16.msra.mxu0 %v152
    %277 = vmatprep.subr.bf16.mxu0 %v151
    %278 = vmatpush1.bf16.msra.mxu0 %v150
    %279 = vmatprep.subr.bf16.mxu0 %v149
    %280 = vmatpush1.bf16.msra.mxu0 %v148
    %281 = vmatprep.subr.bf16.mxu0 0
    %282 = vmatpush2.bf16.msra.mxu0 0
    %283 = vmatprep.subr.bf16.mxu0 0
    %284 = vmatpush2.bf16.msra.mxu0 0
    %285 = vmatprep.subr.bf16.mxu0 0
    %286 = vmatpush2.bf16.msra.mxu0 0
    %287 = vmatprep.subr.bf16.mxu0 0
    %288 = vmatpush2.bf16.msra.mxu0 0
    %289 = vmatprep.subr.bf16.mxu0 0
    %290 = vmatpush2.bf16.msra.mxu0 0
    %291 = vmatprep.subr.bf16.mxu0 0
    %292 = vmatpush2.bf16.msra.mxu0 0
    %293 = vmatprep.subr.bf16.mxu0 0
    %294 = vmatpush2.bf16.msra.mxu0 0
    %295 = vmatprep.subr.bf16.mxu0 0
    %296 = vmatpush2.bf16.msra.mxu0 0
    %297 = vmatprep.mubr.bf16.mxu0 0
    %298 = vmatmul.mubr.bf16.gmra.mxu0 %v158
    %v299 = vpop.f32.mrf.mxu0
    %v300 = vadd.f32 0.0, %v299
    %v301 = vpop.f32.mrf.mxu0
    %v302 = vadd.f32 0.0, %v301
    %v303 = vpop.f32.mrf.mxu0
    %v304 = vadd.f32 0.0, %v303
    %v305 = vpop.f32.mrf.mxu0
    %v306 = vadd.f32 0.0, %v305
    %307 = vmatprep.mubr.bf16.mxu0 0
    %308 = vmatmul.mubr.bf16.gmra.mxu0 %v161
    %v309 = vpop.f32.mrf.mxu0
    %v310 = vadd.f32 0.0, %v309
    %v311 = vpop.f32.mrf.mxu0
    %v312 = vadd.f32 0.0, %v311
    %v313 = vpop.f32.mrf.mxu0
    %v314 = vpop.f32.mrf.mxu0
    %315 = vdwg.mxu0
    %v316 = vadd.f32 %v249, %v300
    %v317 = vadd.f32 %v251, %v302
    %v318 = vadd.f32 %v253, %v304
    %v319 = vadd.f32 %v255, %v306
    %v320 = vadd.f32 %v259, %v310
    %v321 = vadd.f32 %v261, %v312
    %322 = vst [vmem:[#allocation5] sm:$0xff] %v316
    %323 = vst [vmem:[#allocation5 + $0x8] sm:$0xff] %v317
    %324 = vst [vmem:[#allocation5 + $0x10] sm:$0xff] %v318
    %325 = vst [vmem:[#allocation5 + $0x18] sm:$0xff] %v319
    %326 = vst [vmem:[#allocation5 + $0x20] sm:$0xff] %v320
    %327 = vst [vmem:[#allocation5 + $0x28] sm:$0xff] %v321
    // Predicated region
    $region14: #{tpu_custom_call.1} parent=1 // pred_check
      _
    $region15: #{tpu_custom_call.1} parent=1 // pred_check_branch
      %329 = sbr.rel (0) target = $region17
    $region16: #{tpu_custom_call.1} parent=1 // pred_region
      %s331 = ssub.s32 768, 768
      %332 = vsyncadd [#allocation4], %s331
      %s333 = sshll.u32 [#allocation5], 4
      %s334 = int_to_ptr.vmem [resolvable:$true] %s333
      %339 = dma.vmem_to_hbm [thread:$0]  %s334, 768, %s2, [#allocation4], 256, 256, 16
    $region17: #{tpu_custom_call.1} parent=1 // pred_fallthru
      _
    // Predicated region
    $region18: #{tpu_custom_call.1} parent=1 // pred_check
      _
    $region19: #{tpu_custom_call.1} parent=1 // pred_check_branch
      %341 = sbr.rel (0) target = $region21
    $region20: #{tpu_custom_call.1} parent=1 // pred_region
      %342 = dma.done [#allocation4], 768
    $region21: #{tpu_custom_call.1} parent=1 // pred_fallthru
      _
    %343 = vsyncpa [#allocation3], 1
    %344 = vsyncpa [#allocation4], 1

// kernel: tpu_custom_call.1
$region0: #{tpu_custom_call.1}
  #allocation0 [shape = 'u32[]', space=smem, size = 0x4, offset = 0x4, fixed_abs, tag = 'smem constant byte address 0x4 - core index']
  #allocation1 [shape = 'u32[144,128]{1,0:T(1,128)}', space=vmem, size = 0x12000, scoped, tag = 'internal scratch']
  %s0 = inlined_call_operand.vmem [shape: s32[24,1], index: 0, kind: input, shape index: {}]
  %s1 = inlined_call_operand.hbm [shape: f32[64,256], index: 1, kind: input, shape index: {}]
  %s2 = inlined_call_operand.hbm [shape: f32[24,256], index: 2, kind: output, shape index: {}]
  %s3 = sld [smem:[#allocation0]]
  $region22: #{tpu_custom_call.1} parent=0
    _
  %s5 = ssub.s32 1, %s3
  %s6 = scalar_select 0, %s5, %s3
  $region1: #{tpu_custom_call.1} parent=0
    #allocation2 [shape = 'u8[65536]{0}', space=vmem, size = 0x10000, scoped, tag = 'input window, operand 1, single buffered']
    #allocation3 [shape = 's32[1]{0}', space=sflag, size = 0x4, scoped, tag = 'scoped memory for tpu_custom_call.1']
    #allocation4 [shape = 's32[1]{0}', space=sflag, size = 0x4, scoped, tag = 'scoped memory for tpu_custom_call.1']
    #allocation5 [shape = 'u8[24576]{0}', space=vmem, size = 0x6000, scoped, tag = 'output window, operand 0, single buffered']
    %7 = vsyncpa [#allocation3], 0
    %8 = vsyncpa [#allocation4], 0
    // Predicated region
    $region2: #{tpu_custom_call.1} parent=1 // pred_check
      _
    $region3: #{tpu_custom_call.1} parent=1 // pred_check_branch
      %10 = sbr.rel (0) target = $region5
    $region4: #{tpu_custom_call.1} parent=1 // pred_region
      _
    $region5: #{tpu_custom_call.1} parent=1 // pred_fallthru
      _
    // Predicated region
    $region6: #{tpu_custom_call.1} parent=1 // pred_check
      _
    $region7: #{tpu_custom_call.1} parent=1 // pred_check_branch
      %12 = sbr.rel (0) target = $region9
    $region8: #{tpu_custom_call.1} parent=1 // pred_region
      %s14 = ssub.s32 2048, 2048
      %15 = vsyncadd [#allocation3], %s14
      %s16 = sshll.u32 [#allocation2], 4
      %s17 = int_to_ptr.vmem [resolvable:$true] %s16
      %22 = dma.hbm_to_vmem [thread:$0]  %s1, 2048, %s17, [#allocation3], 256, 256, 16
    $region9: #{tpu_custom_call.1} parent=1 // pred_fallthru
      _
    // Predicated region
    $region10: #{tpu_custom_call.1} parent=1 // pred_check
      _
    $region11: #{tpu_custom_call.1} parent=1 // pred_check_branch
      %24 = sbr.rel (0) target = $region13
    $region12: #{tpu_custom_call.1} parent=1 // pred_region
      %25 = dma.done [#allocation3], 2048
    $region13: #{tpu_custom_call.1} parent=1 // pred_fallthru
      _
    %v27 = vld [vmem:[%s0] sm:$0xff]
    %v28 = vld [vmem:[%s0 + $0x8] sm:$0xff]
    %v29 = vld [vmem:[%s0 + $0x10] sm:$0xff]
    %v30 = vld [vmem:[#allocation2] sm:$0xff]
    %v31 = vld [vmem:[#allocation2 + $0x8] sm:$0xff]
    %v32 = vld [vmem:[#allocation2 + $0x10] sm:$0xff]
    %v33 = vld [vmem:[#allocation2 + $0x18] sm:$0xff]
    %v34 = vld [vmem:[#allocation2 + $0x20] sm:$0xff]
    %v35 = vld [vmem:[#allocation2 + $0x28] sm:$0xff]
    %v36 = vld [vmem:[#allocation2 + $0x30] sm:$0xff]
    %v37 = vld [vmem:[#allocation2 + $0x38] sm:$0xff]
    %v38 = vld [vmem:[#allocation2 + $0x40] sm:$0xff]
    %v39 = vld [vmem:[#allocation2 + $0x48] sm:$0xff]
    %v40 = vld [vmem:[#allocation2 + $0x50] sm:$0xff]
    %v41 = vld [vmem:[#allocation2 + $0x58] sm:$0xff]
    %v42 = vld [vmem:[#allocation2 + $0x60] sm:$0xff]
    %v43 = vld [vmem:[#allocation2 + $0x68] sm:$0xff]
    %v44 = vld [vmem:[#allocation2 + $0x70] sm:$0xff]
    %v45 = vld [vmem:[#allocation2 + $0x78] sm:$0xff]
    %v46 = vlaneseq
    %v47 = vand.u32 %v46, 127
    %48 = vset.pattern.permute.xlu0 0
    %49 = vperm.xlu0 %48, %v27
    %v50 = vpop.permute.xlu0 %49
    %51 = vset.pattern.permute.xlu0 0
    %52 = vperm.xlu0 %51, %v28
    %v53 = vpop.permute.xlu0 %52
    %54 = vset.pattern.permute.xlu0 0
    %55 = vperm.xlu0 %54, %v29
    %v56 = vpop.permute.xlu0 %55
    %vm57 = vcmp.eq.s32.totalorder %v47, %v50
    %vm58 = vcmp.eq.s32.totalorder %v47, %v53
    %vm59 = vcmp.eq.s32.totalorder %v47, %v56
    %v60 = vsel %vm57, 1, 0
    %v61 = vsel %vm58, 1, 0
    %v62 = vsel %vm59, 1, 0
    %v63 = vcvt.s32.f32 %v60
    %v64 = vcvt.s32.f32 %v61
    %v65 = vcvt.s32.f32 %v62
    %v66 = vpack.c.bf16 %v64, %v63
    %v67 = vpack.c.bf16 %v65, %v65
    %v68 = vpack.c.bf16 %v32, %v30
    %v69 = vpack.c.bf16 %v33, %v31
    %v70 = vpack.c.bf16 %v36, %v34
    %v71 = vpack.c.bf16 %v37, %v35
    %v72 = vpack.c.bf16 %v40, %v38
    %v73 = vpack.c.bf16 %v41, %v39
    %v74 = vpack.c.bf16 %v44, %v42
    %v75 = vpack.c.bf16 %v45, %v43
    %v76 = vunpack.c.l.bf16 %v68
    %v77 = vunpack.c.l.bf16 %v69
    %v78 = vunpack.c.h.bf16 %v68
    %v79 = vunpack.c.h.bf16 %v69
    %v80 = vunpack.c.l.bf16 %v70
    %v81 = vunpack.c.l.bf16 %v71
    %v82 = vunpack.c.h.bf16 %v70
    %v83 = vunpack.c.h.bf16 %v71
    %v84 = vunpack.c.l.bf16 %v72
    %v85 = vunpack.c.l.bf16 %v73
    %v86 = vunpack.c.h.bf16 %v72
    %v87 = vunpack.c.h.bf16 %v73
    %v88 = vunpack.c.l.bf16 %v74
    %v89 = vunpack.c.l.bf16 %v75
    %v90 = vunpack.c.h.bf16 %v74
    %v91 = vunpack.c.h.bf16 %v75
    %v92 = vsub.f32 %v30, %v76
    %v93 = vsub.f32 %v31, %v77
    %v94 = vsub.f32 %v32, %v78
    %v95 = vsub.f32 %v33, %v79
    %v96 = vsub.f32 %v34, %v80
    %v97 = vsub.f32 %v35, %v81
    %v98 = vsub.f32 %v36, %v82
    %v99 = vsub.f32 %v37, %v83
    %v100 = vsub.f32 %v38, %v84
    %v101 = vsub.f32 %v39, %v85
    %v102 = vsub.f32 %v40, %v86
    %v103 = vsub.f32 %v41, %v87
    %v104 = vsub.f32 %v42, %v88
    %v105 = vsub.f32 %v43, %v89
    %v106 = vsub.f32 %v44, %v90
    %v107 = vsub.f32 %v45, %v91
    %v108 = vpack.c.bf16 %v94, %v92
    %v109 = vpack.c.bf16 %v95, %v93
    %v110 = vpack.c.bf16 %v98, %v96
    %v111 = vpack.c.bf16 %v99, %v97
    %v112 = vpack.c.bf16 %v102, %v100
    %v113 = vpack.c.bf16 %v103, %v101
    %v114 = vpack.c.bf16 %v106, %v104
    %v115 = vpack.c.bf16 %v107, %v105
    %v116 = vunpack.c.l.bf16 %v108
    %v117 = vunpack.c.l.bf16 %v109
    %v118 = vunpack.c.h.bf16 %v108
    %v119 = vunpack.c.h.bf16 %v109
    %v120 = vunpack.c.l.bf16 %v110
    %v121 = vunpack.c.l.bf16 %v111
    %v122 = vunpack.c.h.bf16 %v110
    %v123 = vunpack.c.h.bf16 %v111
    %v124 = vunpack.c.l.bf16 %v112
    %v125 = vunpack.c.l.bf16 %v113
    %v126 = vunpack.c.h.bf16 %v112
    %v127 = vunpack.c.h.bf16 %v113
    %v128 = vunpack.c.l.bf16 %v114
    %v129 = vunpack.c.l.bf16 %v115
    %v130 = vunpack.c.h.bf16 %v114
    %v131 = vunpack.c.h.bf16 %v115
    %v132 = vsub.f32 %v92, %v116
    %v133 = vsub.f32 %v93, %v117
    %v134 = vsub.f32 %v94, %v118
    %v135 = vsub.f32 %v95, %v119
    %v136 = vsub.f32 %v96, %v120
    %v137 = vsub.f32 %v97, %v121
    %v138 = vsub.f32 %v98, %v122
    %v139 = vsub.f32 %v99, %v123
    %v140 = vsub.f32 %v100, %v124
    %v141 = vsub.f32 %v101, %v125
    %v142 = vsub.f32 %v102, %v126
    %v143 = vsub.f32 %v103, %v127
    %v144 = vsub.f32 %v104, %v128
    %v145 = vsub.f32 %v105, %v129
    %v146 = vsub.f32 %v106, %v130
    %v147 = vsub.f32 %v107, %v131
    %v148 = vpack.c.bf16 %v134, %v132
    %v149 = vpack.c.bf16 %v135, %v133
    %v150 = vpack.c.bf16 %v138, %v136
    %v151 = vpack.c.bf16 %v139, %v137
    %v152 = vpack.c.bf16 %v142, %v140
    %v153 = vpack.c.bf16 %v143, %v141
    %v154 = vpack.c.bf16 %v146, %v144
    %v155 = vpack.c.bf16 %v147, %v145
    %vm156 = vcmask 523264
    %v158 = vsel %vm156, %v66, 0
    %v161 = vsel %vm156, %v67, 0
    %163 = vmatprep.subr.bf16.mxu0 0
    %164 = vmatpush1.bf16.msra.mxu0 0
    %165 = vmatprep.subr.bf16.mxu0 0
    %166 = vmatpush1.bf16.msra.mxu0 0
    %167 = vmatprep.subr.bf16.mxu0 0
    %168 = vmatpush1.bf16.msra.mxu0 0
    %169 = vmatprep.subr.bf16.mxu0 0
    %170 = vmatpush1.bf16.msra.mxu0 0
    %171 = vmatprep.subr.bf16.mxu0 %v115
    %172 = vmatpush1.bf16.msra.mxu0 %v114
    %173 = vmatprep.subr.bf16.mxu0 %v113
    %174 = vmatpush1.bf16.msra.mxu0 %v112
    %175 = vmatprep.subr.bf16.mxu0 %v111
    %176 = vmatpush1.bf16.msra.mxu0 %v110
    %177 = vmatprep.subr.bf16.mxu0 %v109
    %178 = vmatpush1.bf16.msra.mxu0 %v108
    %179 = vmatprep.subr.bf16.mxu0 0
    %180 = vmatpush2.bf16.msra.mxu0 0
    %181 = vmatprep.subr.bf16.mxu0 0
    %182 = vmatpush2.bf16.msra.mxu0 0
    %183 = vmatprep.subr.bf16.mxu0 0
    %184 = vmatpush2.bf16.msra.mxu0 0
    %185 = vmatprep.subr.bf16.mxu0 0
    %186 = vmatpush2.bf16.msra.mxu0 0
    %187 = vmatprep.subr.bf16.mxu0 0
    %188 = vmatpush2.bf16.msra.mxu0 0
    %189 = vmatprep.subr.bf16.mxu0 0
    %190 = vmatpush2.bf16.msra.mxu0 0
    %191 = vmatprep.subr.bf16.mxu0 0
    %192 = vmatpush2.bf16.msra.mxu0 0
    %193 = vmatprep.subr.bf16.mxu0 0
    %194 = vmatpush2.bf16.msra.mxu0 0
    %195 = vmatprep.mubr.bf16.mxu0 0
    %196 = vmatmul.mubr.bf16.gmra.mxu0 %v158
    %v197 = vpop.f32.mrf.mxu0
    %v198 = vadd.f32 0.0, %v197
    %v199 = vpop.f32.mrf.mxu0
    %v200 = vadd.f32 0.0, %v199
    %v201 = vpop.f32.mrf.mxu0
    %v202 = vadd.f32 0.0, %v201
    %v203 = vpop.f32.mrf.mxu0
    %v204 = vadd.f32 0.0, %v203
    %205 = vmatprep.mubr.bf16.mxu0 0
    %206 = vmatmul.mubr.bf16.gmra.mxu0 %v161
    %v207 = vpop.f32.mrf.mxu0
    %v208 = vadd.f32 0.0, %v207
    %v209 = vpop.f32.mrf.mxu0
    %v210 = vadd.f32 0.0, %v209
    %v211 = vpop.f32.mrf.mxu0
    %v212 = vpop.f32.mrf.mxu0
    %213 = vdwg.mxu0
    %214 = vmatprep.subr.bf16.mxu0 0
    %215 = vmatpush1.bf16.msra.mxu0 0
    %216 = vmatprep.subr.bf16.mxu0 0
    %217 = vmatpush1.bf16.msra.mxu0 0
    %218 = vmatprep.subr.bf16.mxu0 0
    %219 = vmatpush1.bf16.msra.mxu0 0
    %220 = vmatprep.subr.bf16.mxu0 0
    %221 = vmatpush1.bf16.msra.mxu0 0
    %222 = vmatprep.subr.bf16.mxu0 %v75
    %223 = vmatpush1.bf16.msra.mxu0 %v74
    %224 = vmatprep.subr.bf16.mxu0 %v73
    %225 = vmatpush1.bf16.msra.mxu0 %v72
    %226 = vmatprep.subr.bf16.mxu0 %v71
    %227 = vmatpush1.bf16.msra.mxu0 %v70
    %228 = vmatprep.subr.bf16.mxu0 %v69
    %229 = vmatpush1.bf16.msra.mxu0 %v68
    %230 = vmatprep.subr.bf16.mxu0 0
    %231 = vmatpush2.bf16.msra.mxu0 0
    %232 = vmatprep.subr.bf16.mxu0 0
    %233 = vmatpush2.bf16.msra.mxu0 0
    %234 = vmatprep.subr.bf16.mxu0 0
    %235 = vmatpush2.bf16.msra.mxu0 0
    %236 = vmatprep.subr.bf16.mxu0 0
    %237 = vmatpush2.bf16.msra.mxu0 0
    %238 = vmatprep.subr.bf16.mxu0 0
    %239 = vmatpush2.bf16.msra.mxu0 0
    %240 = vmatprep.subr.bf16.mxu0 0
    %241 = vmatpush2.bf16.msra.mxu0 0
    %242 = vmatprep.subr.bf16.mxu0 0
    %243 = vmatpush2.bf16.msra.mxu0 0
    %244 = vmatprep.subr.bf16.mxu0 0
    %245 = vmatpush2.bf16.msra.mxu0 0
    %246 = vmatprep.mubr.bf16.mxu0 0
    %247 = vmatmul.mubr.bf16.gmra.mxu0 %v158
    %v248 = vpop.f32.mrf.mxu0
    %v249 = vadd.f32 %v198, %v248
    %v250 = vpop.f32.mrf.mxu0
    %v251 = vadd.f32 %v200, %v250
    %v252 = vpop.f32.mrf.mxu0
    %v253 = vadd.f32 %v202, %v252
    %v254 = vpop.f32.mrf.mxu0
    %v255 = vadd.f32 %v204, %v254
    %256 = vmatprep.mubr.bf16.mxu0 0
    %257 = vmatmul.mubr.bf16.gmra.mxu0 %v161
    %v258 = vpop.f32.mrf.mxu0
    %v259 = vadd.f32 %v208, %v258
    %v260 = vpop.f32.mrf.mxu0
    %v261 = vadd.f32 %v210, %v260
    %v262 = vpop.f32.mrf.mxu0
    %v263 = vpop.f32.mrf.mxu0
    %264 = vdwg.mxu0
    %265 = vmatprep.subr.bf16.mxu0 0
    %266 = vmatpush1.bf16.msra.mxu0 0
    %267 = vmatprep.subr.bf16.mxu0 0
    %268 = vmatpush1.bf16.msra.mxu0 0
    %269 = vmatprep.subr.bf16.mxu0 0
    %270 = vmatpush1.bf16.msra.mxu0 0
    %271 = vmatprep.subr.bf16.mxu0 0
    %272 = vmatpush1.bf16.msra.mxu0 0
    %273 = vmatprep.subr.bf16.mxu0 %v155
    %274 = vmatpush1.bf16.msra.mxu0 %v154
    %275 = vmatprep.subr.bf16.mxu0 %v153
    %276 = vmatpush1.bf16.msra.mxu0 %v152
    %277 = vmatprep.subr.bf16.mxu0 %v151
    %278 = vmatpush1.bf16.msra.mxu0 %v150
    %279 = vmatprep.subr.bf16.mxu0 %v149
    %280 = vmatpush1.bf16.msra.mxu0 %v148
    %281 = vmatprep.subr.bf16.mxu0 0
    %282 = vmatpush2.bf16.msra.mxu0 0
    %283 = vmatprep.subr.bf16.mxu0 0
    %284 = vmatpush2.bf16.msra.mxu0 0
    %285 = vmatprep.subr.bf16.mxu0 0
    %286 = vmatpush2.bf16.msra.mxu0 0
    %287 = vmatprep.subr.bf16.mxu0 0
    %288 = vmatpush2.bf16.msra.mxu0 0
    %289 = vmatprep.subr.bf16.mxu0 0
    %290 = vmatpush2.bf16.msra.mxu0 0
    %291 = vmatprep.subr.bf16.mxu0 0
    %292 = vmatpush2.bf16.msra.mxu0 0
    %293 = vmatprep.subr.bf16.mxu0 0
    %294 = vmatpush2.bf16.msra.mxu0 0
    %295 = vmatprep.subr.bf16.mxu0 0
    %296 = vmatpush2.bf16.msra.mxu0 0
    %297 = vmatprep.mubr.bf16.mxu0 0
    %298 = vmatmul.mubr.bf16.gmra.mxu0 %v158
    %v299 = vpop.f32.mrf.mxu0
    %v300 = vadd.f32 0.0, %v299
    %v301 = vpop.f32.mrf.mxu0
    %v302 = vadd.f32 0.0, %v301
    %v303 = vpop.f32.mrf.mxu0
    %v304 = vadd.f32 0.0, %v303
    %v305 = vpop.f32.mrf.mxu0
    %v306 = vadd.f32 0.0, %v305
    %307 = vmatprep.mubr.bf16.mxu0 0
    %308 = vmatmul.mubr.bf16.gmra.mxu0 %v161
    %v309 = vpop.f32.mrf.mxu0
    %v310 = vadd.f32 0.0, %v309
    %v311 = vpop.f32.mrf.mxu0
    %v312 = vadd.f32 0.0, %v311
    %v313 = vpop.f32.mrf.mxu0
    %v314 = vpop.f32.mrf.mxu0
    %315 = vdwg.mxu0
    %v316 = vadd.f32 %v249, %v300
    %v317 = vadd.f32 %v251, %v302
    %v318 = vadd.f32 %v253, %v304
    %v319 = vadd.f32 %v255, %v306
    %v320 = vadd.f32 %v259, %v310
    %v321 = vadd.f32 %v261, %v312
    %322 = vst [vmem:[#allocation5] sm:$0xff] %v316
    %323 = vst [vmem:[#allocation5 + $0x8] sm:$0xff] %v317
    %324 = vst [vmem:[#allocation5 + $0x10] sm:$0xff] %v318
    %325 = vst [vmem:[#allocation5 + $0x18] sm:$0xff] %v319
    %326 = vst [vmem:[#allocation5 + $0x20] sm:$0xff] %v320
    %327 = vst [vmem:[#allocation5 + $0x28] sm:$0xff] %v321
    // Predicated region
    $region14: #{tpu_custom_call.1} parent=1 // pred_check
      _
    $region15: #{tpu_custom_call.1} parent=1 // pred_check_branch
      %329 = sbr.rel (0) target = $region17
    $region16: #{tpu_custom_call.1} parent=1 // pred_region
      %s331 = ssub.s32 768, 768
      %332 = vsyncadd [#allocation4], %s331
      %s333 = sshll.u32 [#allocation5], 4
      %s334 = int_to_ptr.vmem [resolvable:$true] %s333
      %339 = dma.vmem_to_hbm [thread:$0]  %s334, 768, %s2, [#allocation4], 256, 256, 16
    $region17: #{tpu_custom_call.1} parent=1 // pred_fallthru
      _
    // Predicated region
    $region18: #{tpu_custom_call.1} parent=1 // pred_check
      _
    $region19: #{tpu_custom_call.1} parent=1 // pred_check_branch
      %341 = sbr.rel (0) target = $region21
    $region20: #{tpu_custom_call.1} parent=1 // pred_region
      %342 = dma.done [#allocation4], 768
    $region21: #{tpu_custom_call.1} parent=1 // pred_fallthru
      _
    %343 = vsyncpa [#allocation3], 1
    %344 = vsyncpa [#allocation4], 1

</llo_original>
